<compile_context>
chip_gen: v7x
topology: tpu7x:2x2x1
jax: 0.10.0
libtpu: 0.0.40
codegen_flags: <defaults>
</compile_context>

<pallas_src>
import functools
import math

import jax
import jax.numpy as jnp
from jax import lax
from jax.experimental import pallas as pl
from jax.experimental.pallas import tpu as pltpu


def _ese_kernel(x_ref, band_ref, w1t_ref, b1_ref, w2t_ref, b2_ref, o_ref, *, hw, chunk):
    # x_ref block: (Bt, C, HW). band: (C, C). w1t: (C, Ch), b1: (1, Ch),
    # w2t: (Ch, C), b2: (1, C).
    bt, C, _ = x_ref.shape
    n_full = hw // chunk
    rem = hw - n_full * chunk

    # ---- pass 1: chunked sum + running max over the spatial (lane) axis -------------
    s0 = jnp.zeros((bt, C), jnp.float32)
    m0 = jnp.full((bt, C), -jnp.inf, dtype=jnp.float32)

    def stats_body(i, carry):
        s_acc, m_acc = carry
        off = pl.multiple_of(i * chunk, chunk)
        xc = x_ref[:, :, pl.ds(off, chunk)].astype(jnp.float32)   # (bt, C, chunk)
        return (s_acc + jnp.sum(xc, axis=-1),
                jnp.maximum(m_acc, jnp.max(xc, axis=-1)))

    if n_full > 0:
        s_acc, m_acc = lax.fori_loop(0, n_full, stats_body, (s0, m0),
                                     unroll=(n_full <= 8))
    else:
        s_acc, m_acc = s0, m0
    if rem > 0:
        # static tail slice; reductions respect the logical extent, no mask needed.
        xt = x_ref[:, :, pl.ds(n_full * chunk, rem)].astype(jnp.float32)
        s_acc = s_acc + jnp.sum(xt, axis=-1)
        m_acc = jnp.maximum(m_acc, jnp.max(xt, axis=-1))

    gp = s_acc * jnp.float32(1.0 / hw)            # (bt, C) mean over true HxW
    mx = m_acc                                    # (bt, C) max over true HxW

    # ---- channel Conv1d(1,1,k) as a banded (Toeplitz) matmul on the MXU --------------
    se = jax.nn.sigmoid(jnp.dot(gp, band_ref[...], preferred_element_type=jnp.float32))
    # gap = max_HW(x * se) == se * max_HW(x)   (exact because sigmoid > 0)
    gap = se * mx                                 # (bt, C)

    # ---- layer2: 1x1 conv (+folded eval BN) -> ReLU -> 1x1 conv -> sigmoid -----------
    h = jnp.dot(gap, w1t_ref[...], preferred_element_type=jnp.float32) + b1_ref[...]
    h = jnp.maximum(h, 0.0)                       # (bt, Ch)
    se2 = jax.nn.sigmoid(
        jnp.dot(h, w2t_ref[...], preferred_element_type=jnp.float32) + b2_ref[...]
    )                                             # (bt, C)

    # ---- pass 2: chunked out = x * (se * se2), re-reading x from VMEM ---------------
    scale_dtype = jnp.bfloat16 if o_ref.dtype == jnp.bfloat16 else jnp.float32
    comb = (se * se2).astype(scale_dtype)[:, :, None]             # (bt, C, 1)

    if n_full > 0:
        # hoist the broadcast out of the loop (JAX does not CSE broadcast_in_dim)
        comb_b = jnp.broadcast_to(comb, (bt, C, chunk))

        def scale_body(i, carry):
            off = pl.multiple_of(i * chunk, chunk)
            xc = x_ref[:, :, pl.ds(off, chunk)].astype(scale_dtype)
            o_ref[:, :, pl.ds(off, chunk)] = (xc * comb_b).astype(o_ref.dtype)
            return carry

        lax.fori_loop(0, n_full, scale_body, 0, unroll=(n_full <= 8))
    if rem > 0:
        off = n_full * chunk
        xt = x_ref[:, :, pl.ds(off, rem)].astype(scale_dtype)
        o_ref[:, :, pl.ds(off, rem)] = (xt * comb).astype(o_ref.dtype)


def _vmem_capacity_bytes():
    """Physical VMEM of the current chip; conservative 64 MiB (v7x) fallback."""
    try:
        cap = int(pltpu.get_tpu_info().vmem_capacity_bytes)
        if cap > 0:
            return cap
    except Exception:
        pass
    return 64 * 1024 * 1024


def _pick_block_b(B, slab_bytes, budget_bytes):
    """Pick a batch-group size bt that divides B, keeps double-buffered in+out slabs
    inside the VMEM budget, and prefers >=4 grid steps (pipeline overlap, both v7x
    TensorCores) as long as each slab is not tiny."""
    cap = max(1, budget_bytes // (4 * slab_bytes))
    divisors = [d for d in range(1, B + 1) if B % d == 0 and d <= cap]
    if not divisors:
        # TODO(synk): single-sample slab exceeds budget -> needs an HW-tiled two-pass grid.
        return 1

    def score(d):
        steps = B // d
        big = d * slab_bytes >= (2 << 20)
        return ((steps >= 4 and big), (steps >= 2 and big), steps >= 4, steps >= 2, d)

    return max(divisors, key=score)


def ese_forward(x, conv1_w, w1, b1, gamma, beta, rmean, rvar, w2, b2,
                eps=1e-5, chunk=512):
    """x: (B, C, H, W) -> (B, C, H, W); dtype of x is preserved (f32 or bf16)."""
    B, C, H, W = x.shape
    HW = H * W
    Ch = w1.shape[0]
    k = int(conv1_w.shape[0])
    pad = k // 2

    # Fold eval-mode BatchNorm into the first 1x1 conv.
    scale = gamma / jnp.sqrt(rvar + eps)                        # (Ch,)
    w1_eff = (w1 * scale[:, None]).astype(jnp.float32)          # (Ch, C)
    b1_eff = ((b1 - rmean) * scale + beta).astype(jnp.float32)  # (Ch,)

    # Channel-axis Conv1d(1,1,k) with zero padding as a banded Toeplitz matrix:
    # se_pre = gp @ band, band[r, c] = taps[j] where c - r = pad - j.
    band = jnp.zeros((C, C), jnp.float32)
    for j in range(k):
        band = band + conv1_w[j].astype(jnp.float32) * jnp.eye(C, k=pad - j,
                                                               dtype=jnp.float32)

    # No wrapper-side padding of HW: BlockSpec last dim = full extent.
    x2 = x.reshape(B, C, HW)

    itemsize = jnp.dtype(x.dtype).itemsize
    slab_bytes = C * HW * itemsize

    vmem_cap = _vmem_capacity_bytes()
    bt = _pick_block_b(B, slab_bytes, budget_bytes=int(0.6 * vmem_cap))
    steps = B // bt

    # VMEM estimate: double-buffered in + out slabs, chunked f32 temporaries,
    # (double-buffered) params, plus headroom; clamp to 0.75 * physical capacity
    # (~48 MiB on v7x, ~96 MiB on v5e/v6e).
    chunk_tmp = min(chunk, HW)
    param_bytes = 2 * (C * C + 2 * C * Ch + C + Ch) * 4
    need = 4 * bt * slab_bytes + 3 * bt * C * chunk_tmp * 4 + param_bytes + (2 << 20)
    vmem_limit = int(min(int(0.75 * vmem_cap), max(16 << 20, need + (4 << 20))))

    kern = functools.partial(_ese_kernel, hw=HW, chunk=chunk)

    out = pl.pallas_call(
        kern,
        out_shape=jax.ShapeDtypeStruct((B, C, HW), x.dtype),
        grid_spec=pltpu.PrefetchScalarGridSpec(
            num_scalar_prefetch=0,
            grid=(steps,),
            in_specs=[
                pl.BlockSpec((bt, C, HW), lambda b: (b, 0, 0)),   # x slab
                pl.BlockSpec((C, C), lambda b: (0, 0)),           # conv1d band matrix
                pl.BlockSpec((C, Ch), lambda b: (0, 0)),          # w1_eff^T
                pl.BlockSpec((1, Ch), lambda b: (0, 0)),          # b1_eff
                pl.BlockSpec((Ch, C), lambda b: (0, 0)),          # w2^T
                pl.BlockSpec((1, C), lambda b: (0, 0)),           # b2
            ],
            out_specs=pl.BlockSpec((bt, C, HW), lambda b: (b, 0, 0)),
        ),
        compiler_params=pltpu.CompilerParams(
            dimension_semantics=("parallel",),
            vmem_limit_bytes=vmem_limit,
        ),
    )(
        x2,
        band,
        w1_eff.T,                                   # (C, Ch)
        b1_eff.reshape(1, Ch),
        w2.astype(jnp.float32).T,                   # (Ch, C)
        b2.astype(jnp.float32).reshape(1, C),
    )

    return out.reshape(B, C, H, W)


def ese_reference(x, conv1_w, w1, b1, gamma, beta, rmean, rvar, w2, b2, eps=1e-5):
    """Pure-JAX reference matching the PyTorch ESE forward (eval-mode BN)."""
    B, C, H, W = x.shape
    k = conv1_w.shape[0]
    pad = k // 2
    gp = jnp.mean(x, axis=(2, 3))                              # (B, C)
    gp_pad = jnp.pad(gp, ((0, 0), (pad, pad)))
    se = jnp.zeros_like(gp)
    for j in range(k):
        se = se + conv1_w[j] * gp_pad[:, j:j + C]
    se = jax.nn.sigmoid(se)[:, :, None, None]
    x1 = x * se
    gap = jnp.max(x1, axis=(2, 3))                             # (B, C)
    z = gap @ w1.T + b1
    z = (z - rmean) / jnp.sqrt(rvar + eps) * gamma + beta
    z = jnp.maximum(z, 0.0)
    se2 = jax.nn.sigmoid(z @ w2.T + b2)[:, :, None, None]
    return x1 * se2


if __name__ == "__main__":
    def run_case(B, C, H, W, case_idx):
        decay, b_hyper = 2, 1
        Ch = C // decay
        # kernel size for conv1: t = int(abs((log2(C)+b)/decay)); k = t if odd else t+1
        t = int(abs((math.log(C, 2) + b_hyper) / decay))
        k = t if t % 2 else t + 1

        key = jax.random.fold_in(jax.random.PRNGKey(0), case_idx)
        keys = jax.random.split(key, 8)
        x = jax.random.normal(keys[0], (B, C, H, W), dtype=jnp.float32)

        # Deterministic synthetic parameters (no checkpoint).
        conv1_w = jax.random.normal(keys[1], (k,), jnp.float32) * 0.5     # Conv1d(1,1,k)
        w1 = jax.random.normal(keys[2], (Ch, C), jnp.float32) * 0.3       # Conv2d(C, C//2, 1)
        b1 = jax.random.normal(keys[3], (Ch,), jnp.float32) * 0.1
        gamma = 1.0 + 0.1 * jax.random.normal(keys[4], (Ch,), jnp.float32)
        beta = 0.1 * jax.random.normal(keys[5], (Ch,), jnp.float32)
        rmean = 0.05 * jnp.arange(Ch, dtype=jnp.float32)
        rvar = 1.0 + 0.02 * jnp.arange(Ch, dtype=jnp.float32)
        w2 = jax.random.normal(keys[6], (C, Ch), jnp.float32) * 0.3       # Conv2d(C//2, C, 1)
        b2 = jax.random.normal(keys[7], (C,), jnp.float32) * 0.1

        out = ese_forward(x, conv1_w, w1, b1, gamma, beta, rmean, rvar, w2, b2)
        out = jax.block_until_ready(out)
        ref = ese_reference(x, conv1_w, w1, b1, gamma, beta, rmean, rvar, w2, b2)
        assert out.shape == (B, C, H, W)
        assert jnp.allclose(out, ref, rtol=1e-5, atol=1e-5), (
            f"mismatch vs pure-JAX reference (B={B}, C={C}, H={H}, W={W})")

    # HW=256: single-window path (no chunk loop), grid = 2.
    run_case(2, 8, 16, 16, 0)
    # HW=576: exercises the chunked stats/scale loop (512 lanes) + 64-lane tail, grid = 4.
    run_case(4, 16, 24, 24, 1)

    print("KERNEL_OK")
</pallas_src>

<mosaic_0001>
module attributes {stable_mosaic.version = 11 : i64} {
  func.func @_ese_kernel(%arg0: i32, %arg1: memref<1x8x256xf32, #tpu.memory_space<vmem>>, %arg2: memref<8x8xf32, #tpu.memory_space<vmem>>, %arg3: memref<8x4xf32, #tpu.memory_space<vmem>>, %arg4: memref<1x4xf32, #tpu.memory_space<vmem>>, %arg5: memref<4x8xf32, #tpu.memory_space<vmem>>, %arg6: memref<1x8xf32, #tpu.memory_space<vmem>>, %arg7: memref<1x8x256xf32, #tpu.memory_space<vmem>>) attributes {dimension_semantics = [#tpu.dimension_semantics<parallel>], iteration_bounds = array<i64: 2>, scalar_prefetch = 0 : i64, scratch_operands = 0 : i64, tpu.core_type = #tpu.core_type<tc>, window_params = [{transform_indices = @transform_0, window_bounds = array<i64: 1, 8, 256>}, {pipeline_mode = #tpu.pipeline_mode<synchronous>, transform_indices = @transform_1, window_bounds = array<i64: 8, 8>}, {pipeline_mode = #tpu.pipeline_mode<synchronous>, transform_indices = @transform_2, window_bounds = array<i64: 8, 4>}, {pipeline_mode = #tpu.pipeline_mode<synchronous>, transform_indices = @transform_3, window_bounds = array<i64: 1, 4>}, {pipeline_mode = #tpu.pipeline_mode<synchronous>, transform_indices = @transform_4, window_bounds = array<i64: 4, 8>}, {pipeline_mode = #tpu.pipeline_mode<synchronous>, transform_indices = @transform_5, window_bounds = array<i64: 1, 8>}, {transform_indices = @transform_6, window_bounds = array<i64: 1, 8, 256>}]} {
    %cst = arith.constant 0.000000e+00 : f32
    %0 = vector.broadcast %cst : f32 to vector<1x8xf32>
    %cst_0 = arith.constant 0xFF800000 : f32
    %1 = vector.broadcast %cst_0 : f32 to vector<1x8xf32>
    %c0 = arith.constant 0 : index
    %c0_1 = arith.constant 0 : index
    %c0_2 = arith.constant 0 : index
    %2 = vector.load %arg1[%c0, %c0_1, %c0_2] : memref<1x8x256xf32, #tpu.memory_space<vmem>>, vector<1x8x256xf32>
    %cst_3 = arith.constant dense<0.000000e+00> : vector<1x8xf32>
    %3 = vector.multi_reduction <add>, %2, %cst_3 [2] : vector<1x8x256xf32> to vector<1x8xf32>
    %4 = arith.addf %0, %3 : vector<1x8xf32>
    %cst_4 = arith.constant dense<0xFF800000> : vector<1x8xf32>
    %5 = vector.multi_reduction <maximumf>, %2, %cst_4 [2] : vector<1x8x256xf32> to vector<1x8xf32>
    %6 = arith.maximumf %1, %5 : vector<1x8xf32>
    %cst_5 = arith.constant 3.906250e-03 : f32
    %7 = vector.broadcast %cst_5 : f32 to vector<1x8xf32>
    %8 = arith.mulf %4, %7 : vector<1x8xf32>
    %c0_6 = arith.constant 0 : index
    %c0_7 = arith.constant 0 : index
    %9 = vector.load %arg2[%c0_6, %c0_7] : memref<8x8xf32, #tpu.memory_space<vmem>>, vector<8x8xf32>
    %cst_8 = arith.constant dense<0.000000e+00> : vector<1x8xf32>
    %10 = tpu.matmul %8, %9, %cst_8 {dimension_numbers = #tpu.dot_dimension_numbers<[1], [0], [0], [1], [0, 0, 1, 1], [], []>} : vector<1x8xf32>, vector<8x8xf32>, vector<1x8xf32> -> vector<1x8xf32>
    %11 = arith.negf %10 : vector<1x8xf32>
    %12 = math.exp %11 : vector<1x8xf32>
    %cst_9 = arith.constant 1.000000e+00 : f32
    %13 = vector.broadcast %cst_9 : f32 to vector<1x8xf32>
    %14 = arith.addf %13, %12 : vector<1x8xf32>
    %15 = arith.divf %13, %14 : vector<1x8xf32>
    %16 = arith.mulf %15, %6 : vector<1x8xf32>
    %c0_10 = arith.constant 0 : index
    %c0_11 = arith.constant 0 : index
    %17 = vector.load %arg3[%c0_10, %c0_11] : memref<8x4xf32, #tpu.memory_space<vmem>>, vector<8x4xf32>
    %cst_12 = arith.constant dense<0.000000e+00> : vector<1x4xf32>
    %18 = tpu.matmul %16, %17, %cst_12 {dimension_numbers = #tpu.dot_dimension_numbers<[1], [0], [0], [1], [0, 0, 1, 1], [], []>} : vector<1x8xf32>, vector<8x4xf32>, vector<1x4xf32> -> vector<1x4xf32>
    %c0_13 = arith.constant 0 : index
    %c0_14 = arith.constant 0 : index
    %19 = vector.load %arg4[%c0_13, %c0_14] : memref<1x4xf32, #tpu.memory_space<vmem>>, vector<1x4xf32>
    %20 = arith.addf %18, %19 : vector<1x4xf32>
    %cst_15 = arith.constant 0.000000e+00 : f32
    %21 = vector.broadcast %cst_15 : f32 to vector<1x4xf32>
    %22 = arith.maximumf %20, %21 : vector<1x4xf32>
    %c0_16 = arith.constant 0 : index
    %c0_17 = arith.constant 0 : index
    %23 = vector.load %arg5[%c0_16, %c0_17] : memref<4x8xf32, #tpu.memory_space<vmem>>, vector<4x8xf32>
    %cst_18 = arith.constant dense<0.000000e+00> : vector<1x8xf32>
    %24 = tpu.matmul %22, %23, %cst_18 {dimension_numbers = #tpu.dot_dimension_numbers<[1], [0], [0], [1], [0, 0, 1, 1], [], []>} : vector<1x4xf32>, vector<4x8xf32>, vector<1x8xf32> -> vector<1x8xf32>
    %c0_19 = arith.constant 0 : index
    %c0_20 = arith.constant 0 : index
    %25 = vector.load %arg6[%c0_19, %c0_20] : memref<1x8xf32, #tpu.memory_space<vmem>>, vector<1x8xf32>
    %26 = arith.addf %24, %25 : vector<1x8xf32>
    %27 = arith.negf %26 : vector<1x8xf32>
    %28 = math.exp %27 : vector<1x8xf32>
    %cst_21 = arith.constant 1.000000e+00 : f32
    %29 = vector.broadcast %cst_21 : f32 to vector<1x8xf32>
    %30 = arith.addf %29, %28 : vector<1x8xf32>
    %31 = arith.divf %29, %30 : vector<1x8xf32>
    %32 = arith.mulf %15, %31 : vector<1x8xf32>
    %33 = vector.shape_cast %32 : vector<1x8xf32> to vector<1x8x1xf32>
    %c0_22 = arith.constant 0 : index
    %c0_23 = arith.constant 0 : index
    %c0_24 = arith.constant 0 : index
    %34 = vector.load %arg1[%c0_22, %c0_23, %c0_24] : memref<1x8x256xf32, #tpu.memory_space<vmem>>, vector<1x8x256xf32>
    %35 = vector.broadcast %33 : vector<1x8x1xf32> to vector<1x8x256xf32>
    %36 = arith.mulf %34, %35 : vector<1x8x256xf32>
    %c0_25 = arith.constant 0 : index
    %c0_26 = arith.constant 0 : index
    %c0_27 = arith.constant 0 : index
    %37 = vector.load %arg7[%c0_25, %c0_26, %c0_27] : memref<1x8x256xf32, #tpu.memory_space<vmem>>, vector<1x8x256xf32>
    tpu.vector_store %arg7[%c0_25, %c0_26, %c0_27], %36 {strides = array<i32>} : memref<1x8x256xf32, #tpu.memory_space<vmem>>, vector<1x8x256xf32>,
    return
  }
  func.func @transform_0(%arg0: i32) -> (i32, i32, i32) {
    %c0_i32 = arith.constant 0 : i32
    %c0_i32_0 = arith.constant 0 : i32
    %c0_i32_1 = arith.constant 0 : i32
    return %arg0, %c0_i32, %c0_i32_0 : i32, i32, i32
  }
  func.func @transform_1(%arg0: i32) -> (i32, i32) {
    %c0_i32 = arith.constant 0 : i32
    %c0_i32_0 = arith.constant 0 : i32
    %c0_i32_1 = arith.constant 0 : i32
    return %c0_i32, %c0_i32_0 : i32, i32
  }
  func.func @transform_2(%arg0: i32) -> (i32, i32) {
    %c0_i32 = arith.constant 0 : i32
    %c0_i32_0 = arith.constant 0 : i32
    %c0_i32_1 = arith.constant 0 : i32
    return %c0_i32, %c0_i32_0 : i32, i32
  }
  func.func @transform_3(%arg0: i32) -> (i32, i32) {
    %c0_i32 = arith.constant 0 : i32
    %c0_i32_0 = arith.constant 0 : i32
    %c0_i32_1 = arith.constant 0 : i32
    return %c0_i32, %c0_i32_0 : i32, i32
  }
  func.func @transform_4(%arg0: i32) -> (i32, i32) {
    %c0_i32 = arith.constant 0 : i32
    %c0_i32_0 = arith.constant 0 : i32
    %c0_i32_1 = arith.constant 0 : i32
    return %c0_i32, %c0_i32_0 : i32, i32
  }
  func.func @transform_5(%arg0: i32) -> (i32, i32) {
    %c0_i32 = arith.constant 0 : i32
    %c0_i32_0 = arith.constant 0 : i32
    %c0_i32_1 = arith.constant 0 : i32
    return %c0_i32, %c0_i32_0 : i32, i32
  }
  func.func @transform_6(%arg0: i32) -> (i32, i32, i32) {
    %c0_i32 = arith.constant 0 : i32
    %c0_i32_0 = arith.constant 0 : i32
    %c0_i32_1 = arith.constant 0 : i32
    return %arg0, %c0_i32, %c0_i32_0 : i32, i32, i32
  }
}

</mosaic_0001>

<llo_original>
// kernel: tpu_custom_call.1
$region0: #{tpu_custom_call.1}
  #allocation0 [shape = 'u32[]', space=smem, size = 0x4, offset = 0x4, fixed_abs, tag = 'smem constant byte address 0x4 - core index']
  #allocation1 [shape = 'u32[144,128]{1,0:T(1,128)}', space=vmem, size = 0x12000, scoped, tag = 'internal scratch']
  %s0 = inlined_call_operand.hbm [shape: f32[2,8,256], index: 0, kind: input, shape index: {}]
  %s1 = inlined_call_operand.vmem [shape: f32[8,8], index: 1, kind: input, shape index: {}]
  %s2 = inlined_call_operand.vmem [shape: f32[8,4], index: 2, kind: input, shape index: {}]
  %s3 = inlined_call_operand.vmem [shape: f32[1,4], index: 3, kind: input, shape index: {}]
  %s4 = inlined_call_operand.vmem [shape: f32[4,8], index: 4, kind: input, shape index: {}]
  %s5 = inlined_call_operand.vmem [shape: f32[1,8], index: 5, kind: input, shape index: {}]
  %s6 = inlined_call_operand.hbm [shape: f32[2,8,256], index: 6, kind: output, shape index: {}]
  %s7 = sld [smem:[#allocation0]]
  $region61: #{tpu_custom_call.1} parent=0
    _
  %s9 = ssub.s32 1, %s7
  %s10 = scalar_select 0, %s9, %s7
  $region1: #{tpu_custom_call.1} parent=0
    #allocation2 [shape = 'u8[16384]{0}', space=vmem, size = 0x4000, scoped, tag = 'input window, operand 0']
    #allocation3 [shape = 's32[2]{0}', space=sflag, size = 0x8, scoped, tag = 'scoped memory for tpu_custom_call.1']
    #allocation4 [shape = 's32[2]{0}', space=sflag, size = 0x8, scoped, tag = 'scoped memory for tpu_custom_call.1']
    #allocation5 [shape = 'u8[16384]{0}', space=vmem, size = 0x4000, scoped, tag = 'output window, operand 0']
    %11 = vsyncpa [#allocation3], 0
    %s12 = scalar_lea.sflag [#allocation3], 1
    %13 = vsyncpa %s12, 0
    %14 = vsyncpa [#allocation4], 0
    %s15 = scalar_lea.sflag [#allocation4], 1
    %16 = vsyncpa %s15, 0
    loop: start=0, step=1, limit=4
    $region2: #{tpu_custom_call.1} parent=1 // loop_pre_header
      _
    $region3: #{tpu_custom_call.1} parent=1 // loop_header
      %s18 = sphi 0, %s22
      %p19 = scmp.ge.s32.totalorder %s18, 4
      %s28 = sphi 0, %s30
      %s31 = sphi 0, %s28
      %s32 = sphi 0, %s31
      %s48 = sphi 0, %s32
      %s52 = sphi 0, %s52
      %s54 = sphi 0, %s52
      %s55 = sphi 0, %s54
      %s69 = sphi 0, %s55
      %s73 = sphi 0, %s73
      %s75 = sphi 0, %s73
      %s76 = sphi 0, %s75
      %s90 = sphi 0, %s76
      %s94 = sphi 0, %s94
      %s96 = sphi 0, %s94
      %s97 = sphi 0, %s96
      %s111 = sphi 0, %s97
      %s115 = sphi 0, %s115
      %s117 = sphi 0, %s115
      %s118 = sphi 0, %s117
      %s132 = sphi 0, %s118
      %s136 = sphi 0, %s136
      %s138 = sphi 0, %s136
      %s139 = sphi 0, %s138
      %s153 = sphi 0, %s139
      %s159 = sphi 0, %s161
      %s162 = sphi 0, %s159
      %s163 = sphi 0, %s162
      %s179 = sphi 0, %s163
    $region4: #{tpu_custom_call.1} parent=1 // loop_header_branch
      %21 = sbr.rel (%p19) target = $region8
    $region5: #{tpu_custom_call.1} parent=1 // loop_body
      %s23 = ssub.s32 %s18, 1
      %s24 = ssub.s32 %s18, 2
      %s25 = sadd.s32 %s18, 1
      %s26 = ssub.s32 %s18, %s25
      %p27 = scmp.eq.s32.totalorder %s26, 0
      %s29 = sadd.s32 %s28, 1
      %s30 = scalar_select %p27, %s28, %s29
      %p33 = pneg %p27
      %p34 = scmp.eq.s32.totalorder %s18, 1
      %p35 = por %p33, %p34
      %p36 = scmp.ne.s32.totalorder %s28, %s31
      %p37 = scmp.eq.s32.totalorder %s18, 0
      %p38 = por %p36, %p37
      %p39 = scmp.ne.s32.totalorder %s28, %s31
      %p40 = scmp.eq.s32.totalorder %s23, 1
      %p41 = por %p39, %p40
      %p42 = scmp.ne.s32.totalorder %s31, %s32
      %p43 = scmp.eq.s32.totalorder %s23, 0
      %p44 = por %p42, %p43
      %p45 = scmp.ne.s32.totalorder %s31, %s32
      %p46 = scmp.eq.s32.totalorder %s24, 1
      %p47 = por %p45, %p46
      %p49 = scmp.ne.s32.totalorder %s32, %s48
      %p50 = scmp.eq.s32.totalorder %s24, 0
      %p51 = por %p49, %p50
      %s53 = sadd.s32 %s52, 1
      %p56 = scmp.eq.s32.totalorder %s18, 1
      %p57 = scmp.ne.s32.totalorder %s52, %s54
      %p58 = scmp.eq.s32.totalorder %s18, 0
      %p59 = por %p57, %p58
      %p60 = scmp.ne.s32.totalorder %s52, %s54
      %p61 = scmp.eq.s32.totalorder %s23, 1
      %p62 = por %p60, %p61
      %p63 = scmp.ne.s32.totalorder %s54, %s55
      %p64 = scmp.eq.s32.totalorder %s23, 0
      %p65 = por %p63, %p64
      %p66 = scmp.ne.s32.totalorder %s54, %s55
      %p67 = scmp.eq.s32.totalorder %s24, 1
      %p68 = por %p66, %p67
      %p70 = scmp.ne.s32.totalorder %s55, %s69
      %p71 = scmp.eq.s32.totalorder %s24, 0
      %p72 = por %p70, %p71
      %s74 = sadd.s32 %s73, 1
      %p77 = scmp.eq.s32.totalorder %s18, 1
      %p78 = scmp.ne.s32.totalorder %s73, %s75
      %p79 = scmp.eq.s32.totalorder %s18, 0
      %p80 = por %p78, %p79
      %p81 = scmp.ne.s32.totalorder %s73, %s75
      %p82 = scmp.eq.s32.totalorder %s23, 1
      %p83 = por %p81, %p82
      %p84 = scmp.ne.s32.totalorder %s75, %s76
      %p85 = scmp.eq.s32.totalorder %s23, 0
      %p86 = por %p84, %p85
      %p87 = scmp.ne.s32.totalorder %s75, %s76
      %p88 = scmp.eq.s32.totalorder %s24, 1
      %p89 = por %p87, %p88
      %p91 = scmp.ne.s32.totalorder %s76, %s90
      %p92 = scmp.eq.s32.totalorder %s24, 0
      %p93 = por %p91, %p92
      %s95 = sadd.s32 %s94, 1
      %p98 = scmp.eq.s32.totalorder %s18, 1
      %p99 = scmp.ne.s32.totalorder %s94, %s96
      %p100 = scmp.eq.s32.totalorder %s18, 0
      %p101 = por %p99, %p100
      %p102 = scmp.ne.s32.totalorder %s94, %s96
      %p103 = scmp.eq.s32.totalorder %s23, 1
      %p104 = por %p102, %p103
      %p105 = scmp.ne.s32.totalorder %s96, %s97
      %p106 = scmp.eq.s32.totalorder %s23, 0
      %p107 = por %p105, %p106
      %p108 = scmp.ne.s32.totalorder %s96, %s97
      %p109 = scmp.eq.s32.totalorder %s24, 1
      %p110 = por %p108, %p109
      %p112 = scmp.ne.s32.totalorder %s97, %s111
      %p113 = scmp.eq.s32.totalorder %s24, 0
      %p114 = por %p112, %p113
      %s116 = sadd.s32 %s115, 1
      %p119 = scmp.eq.s32.totalorder %s18, 1
      %p120 = scmp.ne.s32.totalorder %s115, %s117
      %p121 = scmp.eq.s32.totalorder %s18, 0
      %p122 = por %p120, %p121
      %p123 = scmp.ne.s32.totalorder %s115, %s117
      %p124 = scmp.eq.s32.totalorder %s23, 1
      %p125 = por %p123, %p124
      %p126 = scmp.ne.s32.totalorder %s117, %s118
      %p127 = scmp.eq.s32.totalorder %s23, 0
      %p128 = por %p126, %p127
      %p129 = scmp.ne.s32.totalorder %s117, %s118
      %p130 = scmp.eq.s32.totalorder %s24, 1
      %p131 = por %p129, %p130
      %p133 = scmp.ne.s32.totalorder %s118, %s132
      %p134 = scmp.eq.s32.totalorder %s24, 0
      %p135 = por %p133, %p134
      %s137 = sadd.s32 %s136, 1
      %p140 = scmp.eq.s32.totalorder %s18, 1
      %p141 = scmp.ne.s32.totalorder %s136, %s138
      %p142 = scmp.eq.s32.totalorder %s18, 0
      %p143 = por %p141, %p142
      %p144 = scmp.ne.s32.totalorder %s136, %s138
      %p145 = scmp.eq.s32.totalorder %s23, 1
      %p146 = por %p144, %p145
      %p147 = scmp.ne.s32.totalorder %s138, %s139
      %p148 = scmp.eq.s32.totalorder %s23, 0
      %p149 = por %p147, %p148
      %p150 = scmp.ne.s32.totalorder %s138, %s139
      %p151 = scmp.eq.s32.totalorder %s24, 1
      %p152 = por %p150, %p151
      %p154 = scmp.ne.s32.totalorder %s139, %s153
      %p155 = scmp.eq.s32.totalorder %s24, 0
      %p156 = por %p154, %p155
      %s157 = ssub.s32 %s18, %s25
      %p158 = scmp.eq.s32.totalorder %s157, 0
      %s160 = sadd.s32 %s159, 1
      %s161 = scalar_select %p158, %s159, %s160
      %p164 = pneg %p158
      %p165 = scmp.eq.s32.totalorder %s18, 1
      %p166 = por %p164, %p165
      %p167 = scmp.ne.s32.totalorder %s159, %s162
      %p168 = scmp.eq.s32.totalorder %s18, 0
      %p169 = por %p167, %p168
      %p170 = scmp.ne.s32.totalorder %s159, %s162
      %p171 = scmp.eq.s32.totalorder %s23, 1
      %p172 = por %p170, %p171
      %p173 = scmp.ne.s32.totalorder %s162, %s163
      %p174 = scmp.eq.s32.totalorder %s23, 0
      %p175 = por %p173, %p174
      %p176 = scmp.ne.s32.totalorder %s162, %s163
      %p177 = scmp.eq.s32.totalorder %s24, 1
      %p178 = por %p176, %p177
      %p180 = scmp.ne.s32.totalorder %s163, %s179
      %p181 = scmp.eq.s32.totalorder %s24, 0
      %p182 = por %p180, %p181
      %p183 = scmp.le.s32.totalorder 1, %s18
      %p184 = scmp.lt.s32.totalorder %s18, 3
      %p185 = pnand %p183, %p184
      %p186 = pneg %p185
      // Predicated region
      $region9: #{tpu_custom_call.1} parent=5 // pred_check
        _
      $region10: #{tpu_custom_call.1} parent=5 // pred_check_branch
        %188 = sbr.rel (%p185) target = $region12
      $region11: #{tpu_custom_call.1} parent=5 // pred_region
        %s189 = ssub.s32 %s18, 1
        // Predicated region
        $region13: #{tpu_custom_call.1} parent=11 // pred_check
          %p190 = pneg %p65
        $region14: #{tpu_custom_call.1} parent=11 // pred_check_branch
          %192 = sbr.rel (%p190) target = $region16
        $region15: #{tpu_custom_call.1} parent=11 // pred_region
          _
        $region16: #{tpu_custom_call.1} parent=11 // pred_fallthru
          _
        // Predicated region
        $region17: #{tpu_custom_call.1} parent=11 // pred_check
          %p193 = pneg %p86
        $region18: #{tpu_custom_call.1} parent=11 // pred_check_branch
          %195 = sbr.rel (%p193) target = $region20
        $region19: #{tpu_custom_call.1} parent=11 // pred_region
          _
        $region20: #{tpu_custom_call.1} parent=11 // pred_fallthru
          _
        // Predicated region
        $region21: #{tpu_custom_call.1} parent=11 // pred_check
          %p196 = pneg %p107
        $region22: #{tpu_custom_call.1} parent=11 // pred_check_branch
          %198 = sbr.rel (%p196) target = $region24
        $region23: #{tpu_custom_call.1} parent=11 // pred_region
          _
        $region24: #{tpu_custom_call.1} parent=11 // pred_fallthru
          _
        // Predicated region
        $region25: #{tpu_custom_call.1} parent=11 // pred_check
          %p199 = pneg %p128
        $region26: #{tpu_custom_call.1} parent=11 // pred_check_branch
          %201 = sbr.rel (%p199) target = $region28
        $region27: #{tpu_custom_call.1} parent=11 // pred_region
          _
        $region28: #{tpu_custom_call.1} parent=11 // pred_fallthru
          _
        // Predicated region
        $region29: #{tpu_custom_call.1} parent=11 // pred_check
          %p202 = pneg %p149
        $region30: #{tpu_custom_call.1} parent=11 // pred_check_branch
          %204 = sbr.rel (%p202) target = $region32
        $region31: #{tpu_custom_call.1} parent=11 // pred_region
          _
        $region32: #{tpu_custom_call.1} parent=11 // pred_fallthru
          _
      $region12: #{tpu_custom_call.1} parent=5 // pred_fallthru
        _
      %p205 = scmp.lt.s32.totalorder %s18, 2
      // Predicated region
      $region33: #{tpu_custom_call.1} parent=5 // pred_check
        %p206 = pneg %p205
      $region34: #{tpu_custom_call.1} parent=5 // pred_check_branch
        %208 = sbr.rel (%p206) target = $region36
      $region35: #{tpu_custom_call.1} parent=5 // pred_region
        // Predicated region
        $region37: #{tpu_custom_call.1} parent=35 // pred_check
          %p209 = pneg %p38
        $region38: #{tpu_custom_call.1} parent=35 // pred_check_branch
          %211 = sbr.rel (%p209) target = $region40
        $region39: #{tpu_custom_call.1} parent=35 // pred_region
          %s212 = sand.u32 %s28, 1
          %s213 = scalar_lea.sflag [#allocation3], %s212
          %s214 = sand.u32 %s28, 1
          %s215 = smul.addr %s214, 16
          %s216 = scalar_lea.vmem [#allocation2], %s215
          %s218 = ssub.s32 256, 256
          %219 = vsyncadd %s213, %s218
          %s220 = smul.addr %s18, 2
          %s221 = smul.addr %s220, 128
          %s222 = scalar_lea.hbm %s0, %s221
          %s224 = sshll.u32 %s216, 4
          %s225 = int_to_ptr.vmem [resolvable:$true] %s224
          %227 = dma.hbm_to_vmem [thread:$0]  %s222, 256, %s225, %s213
        $region40: #{tpu_custom_call.1} parent=35 // pred_fallthru
          _
      $region36: #{tpu_custom_call.1} parent=5 // pred_fallthru
        _
      %p228 = scmp.le.s32.totalorder 1, %s18
      %p229 = scmp.lt.s32.totalorder %s18, 3
      %p230 = pnand %p228, %p229
      %p231 = pneg %p230
      // Predicated region
      $region41: #{tpu_custom_call.1} parent=5 // pred_check
        _
      $region42: #{tpu_custom_call.1} parent=5 // pred_check_branch
        %233 = sbr.rel (%p230) target = $region44
      $region43: #{tpu_custom_call.1} parent=5 // pred_region
        %s234 = ssub.s32 %s18, 1
        %s235 = sand.u32 %s31, 1
        %s236 = scalar_lea.sflag [#allocation3], %s235
        %s237 = sand.u32 %s31, 1
        %s238 = smul.addr %s237, 16
        %s239 = scalar_lea.vmem [#allocation2], %s238
        // Predicated region
        $region45: #{tpu_custom_call.1} parent=43 // pred_check
          %p240 = pneg %p44
        $region46: #{tpu_custom_call.1} parent=43 // pred_check_branch
          %242 = sbr.rel (%p240) target = $region48
        $region47: #{tpu_custom_call.1} parent=43 // pred_region
          %243 = dma.done %s236, 256
        $region48: #{tpu_custom_call.1} parent=43 // pred_fallthru
          _
        %s244 = sand.u32 %s31, 1
        %s245 = scalar_lea.sflag [#allocation3], %s244
        %s246 = sand.u32 %s31, 1
        %s247 = smul.addr %s246, 16
        %s248 = scalar_lea.vmem [#allocation2], %s247
        %p249 = pneg %p44
        %p250 = pneg %p41
        %p251 = pneg %p65
        %p252 = pneg %p62
        %p253 = pneg %p86
        %p254 = pneg %p83
        %p255 = pneg %p107
        %p256 = pneg %p104
        %p257 = pneg %p128
        %p258 = pneg %p125
        %p259 = pneg %p149
        %p260 = pneg %p146
        %p261 = pneg %p175
        %p262 = pneg %p172
        %s263 = sand.u32 %s162, 1
        %s264 = scalar_lea.sflag [#allocation4], %s263
        %s265 = sand.u32 %s162, 1
        %s266 = smul.addr %s265, 16
        %s267 = scalar_lea.vmem [#allocation5], %s266
        %v268 = vld [vmem:[%s239] sm:$0xff]
        %v269 = vld [vmem:[%s239 + $0x8] sm:$0xff]
        %v270 = vadd.f32 %v268, %v269
        %271 = vadd.xlane.f32.xlu0 %v270
        %v272 = vpop.xlane.xlu0 %271
        %v273 = vadd.f32 %v272, 0.0
        %v274 = vmax.f32 %v268, %v269
        %275 = vmax.xlane.f32.xlu0 %v274
        %v276 = vpop.xlane.xlu0 %275
        %v277 = vmul.f32 %v273, 0.00390625
        %v278 = vld [vmem:[%s1] sm:$0xff]
        %v280 = vlaneseq
        %v281 = vand.u32 %v280, 127
        %v282 = vlaneseq
        %v283 = vshrl.u32 %v282, 7
        %v284 = vsub.s32 %v281, %v283
        %v285 = vrot.slane %v277, %v284
        %vm286 = vcmask 64512
        %v287 = vsel %vm286, %v285, 0
        %289 = vmatprep.subr.mxu0 0.0
        %290 = vmatpush1.msra.mxu0 %v278
        %291 = vmatprep.subr.mxu0 0.0
        %292 = vmatpush1.msra.mxu0 0.0
        %293 = vmatprep.subr.mxu0 0.0
        %294 = vmatpush1.msra.mxu0 0.0
        %295 = vmatprep.subr.mxu0 0.0
        %296 = vmatpush1.msra.mxu0 0.0
        %297 = vmatprep.subr.mxu0 0.0
        %298 = vmatpush1.msra.mxu0 0.0
        %299 = vmatprep.subr.mxu0 0.0
        %300 = vmatpush1.msra.mxu0 0.0
        %301 = vmatprep.subr.mxu0 0.0
        %302 = vmatpush1.msra.mxu0 0.0
        %303 = vmatprep.subr.mxu0 0.0
        %304 = vmatpush1.msra.mxu0 0.0
        %305 = vmatprep.subr.mxu0 0.0
        %306 = vmatpush1.msra.mxu0 0.0
        %307 = vmatprep.subr.mxu0 0.0
        %308 = vmatpush1.msra.mxu0 0.0
        %309 = vmatprep.subr.mxu0 0.0
        %310 = vmatpush1.msra.mxu0 0.0
        %311 = vmatprep.subr.mxu0 0.0
        %312 = vmatpush1.msra.mxu0 0.0
        %313 = vmatprep.subr.mxu0 0.0
        %314 = vmatpush1.msra.mxu0 0.0
        %315 = vmatprep.subr.mxu0 0.0
        %316 = vmatpush1.msra.mxu0 0.0
        %317 = vmatprep.subr.mxu0 0.0
        %318 = vmatpush1.msra.mxu0 0.0
        %319 = vmatprep.subr.mxu0 0.0
        %320 = vmatpush1.msra.mxu0 0.0
        %321 = vmatprep.subr.mxu0 0.0
        %322 = vmatpush1.msra.mxu0 0.0
        %323 = vmatprep.subr.mxu0 0.0
        %324 = vmatpush1.msra.mxu0 0.0
        %325 = vmatprep.subr.mxu0 0.0
        %326 = vmatpush1.msra.mxu0 0.0
        %327 = vmatprep.subr.mxu0 0.0
        %328 = vmatpush1.msra.mxu0 0.0
        %329 = vmatprep.subr.mxu0 0.0
        %330 = vmatpush1.msra.mxu0 0.0
        %331 = vmatprep.subr.mxu0 0.0
        %332 = vmatpush1.msra.mxu0 0.0
        %333 = vmatprep.subr.mxu0 0.0
        %334 = vmatpush1.msra.mxu0 0.0
        %335 = vmatprep.subr.mxu0 0.0
        %336 = vmatpush1.msra.mxu0 0.0
        %337 = vmatprep.subr.mxu0 0.0
        %338 = vmatpush1.msra.mxu0 0.0
        %339 = vmatprep.subr.mxu0 0.0
        %340 = vmatpush1.msra.mxu0 0.0
        %341 = vmatprep.subr.mxu0 0.0
        %342 = vmatpush1.msra.mxu0 0.0
        %343 = vmatprep.subr.mxu0 0.0
        %344 = vmatpush1.msra.mxu0 0.0
        %345 = vmatprep.subr.mxu0 0.0
        %346 = vmatpush1.msra.mxu0 0.0
        %347 = vmatprep.subr.mxu0 0.0
        %348 = vmatpush1.msra.mxu0 0.0
        %349 = vmatprep.subr.mxu0 0.0
        %350 = vmatpush1.msra.mxu0 0.0
        %351 = vmatprep.subr.mxu0 0.0
        %352 = vmatpush1.msra.mxu0 0.0
        %353 = vmatprep.mubr.f32.mxu0 0.0
        %354 = vmatmul.mubr.f32.gmra.mrb[0].mxu0 %v287
        %v355 = vpop.f32.mrb[0].mxu0
        %v356 = vadd.f32 0.0, %v355
        %v357 = vpop.f32.mrb[0].mxu0
        %358 = vdwg.mxu0
        %v359 = vxor.u32 %v356, 2147483648
        %v360 = vmul.f32 %v359, 1.442695
        %v361 = vpow.pop %v360
        %v362 = vadd.f32 %v361, 1.0
        %v363 = vrcp.pop %v362
        %v364 = vmul.f32 1.0, %v363
        %v366 = vlaneseq
        %v367 = vshrl.u32 %v366, 7
        %v368 = vsub.s32 %v281, %v367
        %v369 = vrot.slane %v276, %v368
        %v371 = vmul.f32 %v364, %v369
        %v372 = vld [vmem:[%s2] sm:$0xff]
        %v373 = vld [vmem:[%s3] sm:$0x1]
        %v375 = vsel %vm286, %v371, 0
        %377 = vmatprep.subr.mxu0 0.0
        %378 = vmatpush1.msra.mxu0 %v372
        %379 = vmatprep.subr.mxu0 0.0
        %380 = vmatpush1.msra.mxu0 0.0
        %381 = vmatprep.subr.mxu0 0.0
        %382 = vmatpush1.msra.mxu0 0.0
        %383 = vmatprep.subr.mxu0 0.0
        %384 = vmatpush1.msra.mxu0 0.0
        %385 = vmatprep.subr.mxu0 0.0
        %386 = vmatpush1.msra.mxu0 0.0
        %387 = vmatprep.subr.mxu0 0.0
        %388 = vmatpush1.msra.mxu0 0.0
        %389 = vmatprep.subr.mxu0 0.0
        %390 = vmatpush1.msra.mxu0 0.0
        %391 = vmatprep.subr.mxu0 0.0
        %392 = vmatpush1.msra.mxu0 0.0
        %393 = vmatprep.subr.mxu0 0.0
        %394 = vmatpush1.msra.mxu0 0.0
        %395 = vmatprep.subr.mxu0 0.0
        %396 = vmatpush1.msra.mxu0 0.0
        %397 = vmatprep.subr.mxu0 0.0
        %398 = vmatpush1.msra.mxu0 0.0
        %399 = vmatprep.subr.mxu0 0.0
        %400 = vmatpush1.msra.mxu0 0.0
        %401 = vmatprep.subr.mxu0 0.0
        %402 = vmatpush1.msra.mxu0 0.0
        %403 = vmatprep.subr.mxu0 0.0
        %404 = vmatpush1.msra.mxu0 0.0
        %405 = vmatprep.subr.mxu0 0.0
        %406 = vmatpush1.msra.mxu0 0.0
        %407 = vmatprep.subr.mxu0 0.0
        %408 = vmatpush1.msra.mxu0 0.0
        %409 = vmatprep.subr.mxu0 0.0
        %410 = vmatpush1.msra.mxu0 0.0
        %411 = vmatprep.subr.mxu0 0.0
        %412 = vmatpush1.msra.mxu0 0.0
        %413 = vmatprep.subr.mxu0 0.0
        %414 = vmatpush1.msra.mxu0 0.0
        %415 = vmatprep.subr.mxu0 0.0
        %416 = vmatpush1.msra.mxu0 0.0
        %417 = vmatprep.subr.mxu0 0.0
        %418 = vmatpush1.msra.mxu0 0.0
        %419 = vmatprep.subr.mxu0 0.0
        %420 = vmatpush1.msra.mxu0 0.0
        %421 = vmatprep.subr.mxu0 0.0
        %422 = vmatpush1.msra.mxu0 0.0
        %423 = vmatprep.subr.mxu0 0.0
        %424 = vmatpush1.msra.mxu0 0.0
        %425 = vmatprep.subr.mxu0 0.0
        %426 = vmatpush1.msra.mxu0 0.0
        %427 = vmatprep.subr.mxu0 0.0
        %428 = vmatpush1.msra.mxu0 0.0
        %429 = vmatprep.subr.mxu0 0.0
        %430 = vmatpush1.msra.mxu0 0.0
        %431 = vmatprep.subr.mxu0 0.0
        %432 = vmatpush1.msra.mxu0 0.0
        %433 = vmatprep.subr.mxu0 0.0
        %434 = vmatpush1.msra.mxu0 0.0
        %435 = vmatprep.subr.mxu0 0.0
        %436 = vmatpush1.msra.mxu0 0.0
        %437 = vmatprep.subr.mxu0 0.0
        %438 = vmatpush1.msra.mxu0 0.0
        %439 = vmatprep.subr.mxu0 0.0
        %440 = vmatpush1.msra.mxu0 0.0
        %441 = vmatprep.mubr.f32.mxu0 0.0
        %442 = vmatmul.mubr.f32.gmra.mrb[0].mxu0 %v375
        %v443 = vpop.f32.mrb[0].mxu0
        %v444 = vadd.f32 %v373, %v443
        %v445 = vpop.f32.mrb[0].mxu0
        %446 = vdwg.mxu0
        %v447 = vmax.f32 %v444, 0.0
        %v448 = vld [vmem:[%s4] sm:$0xf]
        %v449 = vld [vmem:[%s5] sm:$0x1]
        %vm450 = vcmask 31744
        %v452 = vsel %vm450, %v447, 0
        %vm454 = vcmask 1043456
        %v456 = vsel %vm454, %v448, 0
        %458 = vmatprep.subr.mxu0 0.0
        %459 = vmatpush1.msra.mxu0 %v456
        %460 = vmatprep.subr.mxu0 0.0
        %461 = vmatpush1.msra.mxu0 0.0
        %462 = vmatprep.subr.mxu0 0.0
        %463 = vmatpush1.msra.mxu0 0.0
        %464 = vmatprep.subr.mxu0 0.0
        %465 = vmatpush1.msra.mxu0 0.0
        %466 = vmatprep.subr.mxu0 0.0
        %467 = vmatpush1.msra.mxu0 0.0
        %468 = vmatprep.subr.mxu0 0.0
        %469 = vmatpush1.msra.mxu0 0.0
        %470 = vmatprep.subr.mxu0 0.0
        %471 = vmatpush1.msra.mxu0 0.0
        %472 = vmatprep.subr.mxu0 0.0
        %473 = vmatpush1.msra.mxu0 0.0
        %474 = vmatprep.subr.mxu0 0.0
        %475 = vmatpush1.msra.mxu0 0.0
        %476 = vmatprep.subr.mxu0 0.0
        %477 = vmatpush1.msra.mxu0 0.0
        %478 = vmatprep.subr.mxu0 0.0
        %479 = vmatpush1.msra.mxu0 0.0
        %480 = vmatprep.subr.mxu0 0.0
        %481 = vmatpush1.msra.mxu0 0.0
        %482 = vmatprep.subr.mxu0 0.0
        %483 = vmatpush1.msra.mxu0 0.0
        %484 = vmatprep.subr.mxu0 0.0
        %485 = vmatpush1.msra.mxu0 0.0
        %486 = vmatprep.subr.mxu0 0.0
        %487 = vmatpush1.msra.mxu0 0.0
        %488 = vmatprep.subr.mxu0 0.0
        %489 = vmatpush1.msra.mxu0 0.0
        %490 = vmatprep.subr.mxu0 0.0
        %491 = vmatpush1.msra.mxu0 0.0
        %492 = vmatprep.subr.mxu0 0.0
        %493 = vmatpush1.msra.mxu0 0.0
        %494 = vmatprep.subr.mxu0 0.0
        %495 = vmatpush1.msra.mxu0 0.0
        %496 = vmatprep.subr.mxu0 0.0
        %497 = vmatpush1.msra.mxu0 0.0
        %498 = vmatprep.subr.mxu0 0.0
        %499 = vmatpush1.msra.mxu0 0.0
        %500 = vmatprep.subr.mxu0 0.0
        %501 = vmatpush1.msra.mxu0 0.0
        %502 = vmatprep.subr.mxu0 0.0
        %503 = vmatpush1.msra.mxu0 0.0
        %504 = vmatprep.subr.mxu0 0.0
        %505 = vmatpush1.msra.mxu0 0.0
        %506 = vmatprep.subr.mxu0 0.0
        %507 = vmatpush1.msra.mxu0 0.0
        %508 = vmatprep.subr.mxu0 0.0
        %509 = vmatpush1.msra.mxu0 0.0
        %510 = vmatprep.subr.mxu0 0.0
        %511 = vmatpush1.msra.mxu0 0.0
        %512 = vmatprep.subr.mxu0 0.0
        %513 = vmatpush1.msra.mxu0 0.0
        %514 = vmatprep.subr.mxu0 0.0
        %515 = vmatpush1.msra.mxu0 0.0
        %516 = vmatprep.subr.mxu0 0.0
        %517 = vmatpush1.msra.mxu0 0.0
        %518 = vmatprep.subr.mxu0 0.0
        %519 = vmatpush1.msra.mxu0 0.0
        %520 = vmatprep.subr.mxu0 0.0
        %521 = vmatpush1.msra.mxu0 0.0
        %522 = vmatprep.mubr.f32.mxu0 0.0
        %523 = vmatmul.mubr.f32.gmra.mrb[0].mxu0 %v452
        %v524 = vpop.f32.mrb[0].mxu0
        %v525 = vadd.f32 %v449, %v524
        %v526 = vpop.f32.mrb[0].mxu0
        %527 = vdwg.mxu0
        %v528 = vxor.u32 %v525, 2147483648
        %v529 = vmul.f32 %v528, 1.442695
        %v530 = vpow.pop %v529
        %v531 = vadd.f32 %v530, 1.0
        %v532 = vrcp.pop %v531
        %v533 = vmul.f32 1.0, %v532
        %v534 = vmul.f32 %v364, %v533
        %v535 = vlaneseq
        %v536 = vshrl.u32 %v535, 7
        %v537 = vsub.s32 0, %v536
        %v538 = vrot.slane %v534, %v537
        %540 = vbcast.lane.b32.xlu0 %v538, 256
        %v541 = vpop.permute.xlu0 %540
        %v542 = vmul.f32 %v268, %v541
        %v543 = vmul.f32 %v269, %v541
        %544 = vst [vmem:[%s267] sm:$0xff] %v542
        %545 = vst [vmem:[%s267 + $0x8] sm:$0xff] %v543
        %s546 = sand.u32 %s162, 1
        %s547 = scalar_lea.sflag [#allocation4], %s546
        %s548 = sand.u32 %s162, 1
        %s549 = smul.addr %s548, 16
        %s550 = scalar_lea.vmem [#allocation5], %s549
        // Predicated region
        $region49: #{tpu_custom_call.1} parent=43 // pred_check
          %p551 = pneg %p172
        $region50: #{tpu_custom_call.1} parent=43 // pred_check_branch
          %553 = sbr.rel (%p551) target = $region52
        $region51: #{tpu_custom_call.1} parent=43 // pred_region
          %s555 = ssub.s32 256, 256
          %556 = vsyncadd %s547, %s555
          %s557 = smul.addr %s23, 2
          %s558 = smul.addr %s557, 128
          %s559 = scalar_lea.hbm %s6, %s558
          %s561 = sshll.u32 %s550, 4
          %s562 = int_to_ptr.vmem [resolvable:$true] %s561
          %564 = dma.vmem_to_hbm [thread:$0]  %s562, 256, %s559, %s547
        $region52: #{tpu_custom_call.1} parent=43 // pred_fallthru
          _
      $region44: #{tpu_custom_call.1} parent=5 // pred_fallthru
        _
      %p565 = scmp.le.s32.totalorder 2, %s18
      // Predicated region
      $region53: #{tpu_custom_call.1} parent=5 // pred_check
        %p566 = pneg %p565
      $region54: #{tpu_custom_call.1} parent=5 // pred_check_branch
        %568 = sbr.rel (%p566) target = $region56
      $region55: #{tpu_custom_call.1} parent=5 // pred_region
        %s569 = ssub.s32 %s18, 2
        // Predicated region
        $region57: #{tpu_custom_call.1} parent=55 // pred_check
          %p570 = pneg %p178
        $region58: #{tpu_custom_call.1} parent=55 // pred_check_branch
          %572 = sbr.rel (%p570) target = $region60
        $region59: #{tpu_custom_call.1} parent=55 // pred_region
          %s573 = sand.u32 %s163, 1
          %s574 = scalar_lea.sflag [#allocation4], %s573
          %s575 = sand.u32 %s163, 1
          %s576 = smul.addr %s575, 16
          %s577 = scalar_lea.vmem [#allocation5], %s576
          %578 = dma.done %s574, 256
        $region60: #{tpu_custom_call.1} parent=55 // pred_fallthru
          _
      $region56: #{tpu_custom_call.1} parent=5 // pred_fallthru
        _
    $region6: #{tpu_custom_call.1} parent=1 // loop_footer
      %s22 = sadd.s32 1, %s18
    $region7: #{tpu_custom_call.1} parent=1 // loop_footer_branch
      %17 = sbr.rel target = $region3
    $region8: #{tpu_custom_call.1} parent=1 // loop_exit
      _
    %579 = vsyncpa [#allocation3], 1
    %s580 = scalar_lea.sflag [#allocation3], 1
    %581 = vsyncpa %s580, 1
    %582 = vsyncpa [#allocation4], 1
    %s583 = scalar_lea.sflag [#allocation4], 1
    %584 = vsyncpa %s583, 1

</llo_original>
